<compile_context>
chip_gen: v5e
topology: v5e:2x2
jax: 0.10.0
libtpu: 0.0.40
codegen_flags: <defaults>
</compile_context>

<pallas_src>
import numpy as np
import jax
import jax.numpy as jnp
from jax.experimental import pallas as pl
from jax.experimental.pallas import tpu as pltpu


def _round_up(n: int, m: int) -> int:
    return ((n + m - 1) // m) * m


def _make_pad_kernel(in_len: int, pad_amount: int, value):
    # `in_len`, `pad_amount` are Python ints and `value` a Python scalar, so they
    # are baked in as literals -- nothing is captured as a traced constant.
    def pad_kernel(x_ref, o_ref):
        # Data region written exactly once ...
        o_ref[:, :in_len] = x_ref[...]
        # ... pad region filled exactly once (only pad_amount columns of constant,
        # not a full-tile fill that gets overwritten).
        o_ref[:, in_len:] = jnp.full(
            (o_ref.shape[0], pad_amount), value, dtype=o_ref.dtype
        )

    return pad_kernel


def pad_up_to(
    x,
    target_length: int,
    mode: str = "constant",
    value=0,
    *,
    force_pallas: bool = False,
    min_pallas_out_elems: int = 1 << 15,
):
    """JAX/Pallas equivalent of PadUpTo.forward (constant mode)."""
    if mode != "constant":
        # TODO(synk): only 'constant' mode implemented; reflect/replicate would
        # need gather-style index maps. The PyTorch module defaults to 'constant'.
        raise NotImplementedError("only mode='constant' is supported")

    in_len = x.shape[-1]
    pad_amount = target_length - in_len
    assert pad_amount >= 0, "target_length must be >= current last-dim length"

    # Fast path: nothing to pad.
    if pad_amount == 0:
        return x

    lead_shape = x.shape[:-1]
    rows = 1
    for d in lead_shape:
        rows *= d

    # Fast path: tiny problems -- launch overhead dominates, let XLA's fused pad win.
    if not force_pallas and rows * target_length < min_pallas_out_elems:
        pad_cfg = [(0, 0)] * (x.ndim - 1) + [(0, pad_amount)]
        return jnp.pad(x, pad_cfg, mode="constant", constant_values=value)

    # Pad value must be a plain Python scalar so the kernel does not close over
    # a device array.
    pad_value = np.asarray(value).item()

    x2d = x.reshape(rows, in_len)  # view-like reshape; no HBM copy

    itemsize = jnp.dtype(x.dtype).itemsize
    sublane = {4: 8, 2: 16, 1: 32}.get(itemsize, 8)

    if rows <= sublane:
        # Full-dim block is always legal regardless of the (8,128) constraint.
        tr = rows
    else:
        # Row-tile size: largest multiple of the sublane tile that keeps the
        # double-buffered (input + output) working set under a conservative
        # ~8 MiB, capped at 1024 rows (measured mem-bound sweet spot), and never
        # larger than the (sublane-rounded) row count. Safe on v5e/v6e (128 MiB
        # VMEM) and v7x (64 MiB VMEM).
        budget_bytes = 8 * 1024 * 1024
        tr = budget_bytes // (2 * (in_len + target_length) * itemsize)
        tr = (tr // sublane) * sublane
        tr = max(sublane, min(tr, 1024))
        tr = min(tr, _round_up(rows, sublane))

    # cdiv grid: the edge tile's out-of-bounds reads are unobserved (their output
    # rows are clipped on write), so no wrapper-side row padding / slicing is
    # needed -- saves a full extra HBM pass over the input and output.
    grid = (pl.cdiv(rows, tr),)
    kernel = _make_pad_kernel(in_len, pad_amount, pad_value)

    # Note: when target_length << 128 the output stores are lane-masked; the
    # tiny-input fast path above covers the worst of that regime. A lane-packing
    # (group rows onto the lane axis) variant is a possible further optimization.
    out2d = pl.pallas_call(
        kernel,
        out_shape=jax.ShapeDtypeStruct((rows, target_length), x.dtype),
        grid=grid,
        in_specs=[pl.BlockSpec((tr, in_len), lambda i: (i, 0))],
        out_specs=pl.BlockSpec((tr, target_length), lambda i: (i, 0)),
        compiler_params=pltpu.CompilerParams(
            dimension_semantics=("parallel",),
            vmem_limit_bytes=32 * 1024 * 1024,
        ),
    )(x2d)

    return out2d.reshape(*lead_shape, target_length)


if __name__ == "__main__":
    key = jax.random.PRNGKey(0)
    k1, k2, k3 = jax.random.split(key, 3)

    # Small case consistent with the module: pad last axis 16 -> 24.
    # force_pallas=True so the Pallas kernel itself is exercised (otherwise this
    # tiny shape would take the jnp.pad fast path).
    x_small = jax.random.normal(k1, (2, 4, 16, 16), dtype=jnp.float32)
    t_small = 24
    out_small = jax.block_until_ready(
        pad_up_to(x_small, t_small, mode="constant", value=0, force_pallas=True)
    )
    ref_small = jnp.pad(
        x_small, ((0, 0), (0, 0), (0, 0), (0, t_small - x_small.shape[-1]))
    )
    assert out_small.shape == (2, 4, 16, 24), out_small.shape
    assert out_small.dtype == x_small.dtype
    assert jnp.allclose(out_small, ref_small), "mismatch vs reference pad (small)"

    # Larger case that naturally takes the tiled Pallas path (multi-step grid).
    x_big = jax.random.normal(k2, (4, 8, 64, 200), dtype=jnp.float32)
    t_big = 256
    out_big = jax.block_until_ready(pad_up_to(x_big, t_big, mode="constant", value=0))
    ref_big = jnp.pad(
        x_big, ((0, 0), (0, 0), (0, 0), (0, t_big - x_big.shape[-1]))
    )
    assert out_big.shape == (4, 8, 64, 256), out_big.shape
    assert out_big.dtype == x_big.dtype
    assert jnp.allclose(out_big, ref_big), "mismatch vs reference pad (large)"

    # Ragged-row case: rows not a multiple of the tile (exercises the cdiv edge
    # tile with clipped writes) and a non-zero pad value.
    x_rag = jax.random.normal(k3, (3, 5, 50, 100), dtype=jnp.float32)
    t_rag = 160
    out_rag = jax.block_until_ready(
        pad_up_to(x_rag, t_rag, mode="constant", value=7, force_pallas=True)
    )
    ref_rag = jnp.pad(
        x_rag,
        ((0, 0), (0, 0), (0, 0), (0, t_rag - x_rag.shape[-1])),
        constant_values=7.0,
    )
    assert out_rag.shape == (3, 5, 50, 160), out_rag.shape
    assert jnp.allclose(out_rag, ref_rag), "mismatch vs reference pad (ragged)"

    print("KERNEL_OK")
</pallas_src>

<mosaic_0001>
module attributes {stable_mosaic.version = 11 : i64} {
  func.func @pad_kernel(%arg0: i32, %arg1: memref<128x16xf32, #tpu.memory_space<vmem>>, %arg2: memref<128x24xf32, #tpu.memory_space<vmem>>) attributes {dimension_semantics = [#tpu.dimension_semantics<parallel>], iteration_bounds = array<i64: 1>, scalar_prefetch = 0 : i64, scratch_operands = 0 : i64, tpu.core_type = #tpu.core_type<tc>, window_params = [{transform_indices = @transform_0, window_bounds = array<i64: 128, 16>}, {transform_indices = @transform_1, window_bounds = array<i64: 128, 24>}]} {
    %c0 = arith.constant 0 : index
    %c0_0 = arith.constant 0 : index
    %0 = vector.load %arg1[%c0, %c0_0] : memref<128x16xf32, #tpu.memory_space<vmem>>, vector<128x16xf32>
    %c0_1 = arith.constant 0 : index
    %c0_2 = arith.constant 0 : index
    %1 = vector.load %arg2[%c0_1, %c0_2] : memref<128x24xf32, #tpu.memory_space<vmem>>, vector<128x16xf32>
    tpu.vector_store %arg2[%c0_1, %c0_2], %0 {strides = array<i32>} : memref<128x24xf32, #tpu.memory_space<vmem>>, vector<128x16xf32>,
    %cst = arith.constant 0.000000e+00 : f32
    %2 = vector.broadcast %cst : f32 to vector<128x8xf32>
    %c0_3 = arith.constant 0 : index
    %c16 = arith.constant 16 : index
    %3 = vector.load %arg2[%c0_3, %c16] : memref<128x24xf32, #tpu.memory_space<vmem>>, vector<128x8xf32>
    tpu.vector_store %arg2[%c0_3, %c16], %2 {strides = array<i32>} : memref<128x24xf32, #tpu.memory_space<vmem>>, vector<128x8xf32>,
    return
  }
  func.func @transform_0(%arg0: i32) -> (i32, i32) {
    %c0_i32 = arith.constant 0 : i32
    %c0_i32_0 = arith.constant 0 : i32
    return %arg0, %c0_i32 : i32, i32
  }
  func.func @transform_1(%arg0: i32) -> (i32, i32) {
    %c0_i32 = arith.constant 0 : i32
    %c0_i32_0 = arith.constant 0 : i32
    return %arg0, %c0_i32 : i32, i32
  }
}

</mosaic_0001>

<llo_original>
// kernel: tpu_custom_call.1
$region0: #{tpu_custom_call.1}
  #allocation0 [shape = 'u32[]', space=smem, size = 0x4, offset = 0x4, fixed_abs, tag = 'smem constant byte address 0x4 - core index']
  #allocation1 [shape = 'u32[72,128]{1,0:T(1,128)}', space=vmem, size = 0x9000, scoped, tag = 'internal scratch']
  %s0 = inlined_call_operand.vmem [shape: f32[128,16], index: 0, kind: input, shape index: {}]
  %s1 = inlined_call_operand.vmem [shape: f32[128,24], index: 1, kind: output, shape index: {}]
  %s2 = sld [smem:[#allocation0]]
  $region14: #{tpu_custom_call.1} parent=0
    _
  %s4 = ssub.s32 1, %s2
  %s5 = scalar_select 0, %s4, %s2
  // Predicated region
  $region2: #{tpu_custom_call.1} parent=0 // pred_check
    _
  $region3: #{tpu_custom_call.1} parent=0 // pred_check_branch
    %7 = sbr.rel (0) target = $region5
  $region4: #{tpu_custom_call.1} parent=0 // pred_region
    _
  $region5: #{tpu_custom_call.1} parent=0 // pred_fallthru
    _
  %v8 = vld [vmem:[%s0] sm:$0xff]
  %v9 = vld [vmem:[%s0 + $0x8] sm:$0xff]
  %v10 = vld [vmem:[%s0 + $0x10] sm:$0xff]
  %v11 = vld [vmem:[%s0 + $0x18] sm:$0xff]
  %v12 = vld [vmem:[%s0 + $0x20] sm:$0xff]
  %v13 = vld [vmem:[%s0 + $0x28] sm:$0xff]
  %v14 = vld [vmem:[%s0 + $0x30] sm:$0xff]
  %v15 = vld [vmem:[%s0 + $0x38] sm:$0xff]
  %v16 = vld [vmem:[%s0 + $0x40] sm:$0xff]
  %v17 = vld [vmem:[%s0 + $0x48] sm:$0xff]
  %v18 = vld [vmem:[%s0 + $0x50] sm:$0xff]
  %v19 = vld [vmem:[%s0 + $0x58] sm:$0xff]
  %v20 = vld [vmem:[%s0 + $0x60] sm:$0xff]
  %v21 = vld [vmem:[%s0 + $0x68] sm:$0xff]
  %v22 = vld [vmem:[%s0 + $0x70] sm:$0xff]
  %v23 = vld [vmem:[%s0 + $0x78] sm:$0xff]
  %vm24 = vcmask 130048
  %25 = vst.msk [vmem:[%s1] sm:$0xff] %vm24, %v8
  %26 = vst.msk [vmem:[%s1 + $0x8] sm:$0xff] %vm24, %v9
  %27 = vst.msk [vmem:[%s1 + $0x10] sm:$0xff] %vm24, %v10
  %28 = vst.msk [vmem:[%s1 + $0x18] sm:$0xff] %vm24, %v11
  %29 = vst.msk [vmem:[%s1 + $0x20] sm:$0xff] %vm24, %v12
  %30 = vst.msk [vmem:[%s1 + $0x28] sm:$0xff] %vm24, %v13
  %31 = vst.msk [vmem:[%s1 + $0x30] sm:$0xff] %vm24, %v14
  %32 = vst.msk [vmem:[%s1 + $0x38] sm:$0xff] %vm24, %v15
  %33 = vst.msk [vmem:[%s1 + $0x40] sm:$0xff] %vm24, %v16
  %34 = vst.msk [vmem:[%s1 + $0x48] sm:$0xff] %vm24, %v17
  %35 = vst.msk [vmem:[%s1 + $0x50] sm:$0xff] %vm24, %v18
  %36 = vst.msk [vmem:[%s1 + $0x58] sm:$0xff] %vm24, %v19
  %37 = vst.msk [vmem:[%s1 + $0x60] sm:$0xff] %vm24, %v20
  %38 = vst.msk [vmem:[%s1 + $0x68] sm:$0xff] %vm24, %v21
  %39 = vst.msk [vmem:[%s1 + $0x70] sm:$0xff] %vm24, %v22
  %40 = vst.msk [vmem:[%s1 + $0x78] sm:$0xff] %vm24, %v23
  %vm41 = vcmask 195712
  %42 = vst.msk [vmem:[%s1] sm:$0xff] %vm41, 0.0
  %43 = vst.msk [vmem:[%s1 + $0x8] sm:$0xff] %vm41, 0.0
  %44 = vst.msk [vmem:[%s1 + $0x10] sm:$0xff] %vm41, 0.0
  %45 = vst.msk [vmem:[%s1 + $0x18] sm:$0xff] %vm41, 0.0
  %46 = vst.msk [vmem:[%s1 + $0x20] sm:$0xff] %vm41, 0.0
  %47 = vst.msk [vmem:[%s1 + $0x28] sm:$0xff] %vm41, 0.0
  %48 = vst.msk [vmem:[%s1 + $0x30] sm:$0xff] %vm41, 0.0
  %49 = vst.msk [vmem:[%s1 + $0x38] sm:$0xff] %vm41, 0.0
  %50 = vst.msk [vmem:[%s1 + $0x40] sm:$0xff] %vm41, 0.0
  %51 = vst.msk [vmem:[%s1 + $0x48] sm:$0xff] %vm41, 0.0
  %52 = vst.msk [vmem:[%s1 + $0x50] sm:$0xff] %vm41, 0.0
  %53 = vst.msk [vmem:[%s1 + $0x58] sm:$0xff] %vm41, 0.0
  %54 = vst.msk [vmem:[%s1 + $0x60] sm:$0xff] %vm41, 0.0
  %55 = vst.msk [vmem:[%s1 + $0x68] sm:$0xff] %vm41, 0.0
  %56 = vst.msk [vmem:[%s1 + $0x70] sm:$0xff] %vm41, 0.0
  %57 = vst.msk [vmem:[%s1 + $0x78] sm:$0xff] %vm41, 0.0
  // Predicated region
  $region6: #{tpu_custom_call.1} parent=0 // pred_check
    _
  $region7: #{tpu_custom_call.1} parent=0 // pred_check_branch
    %59 = sbr.rel (0) target = $region9
  $region8: #{tpu_custom_call.1} parent=0 // pred_region
    _
  $region9: #{tpu_custom_call.1} parent=0 // pred_fallthru
    _
  // Predicated region
  $region10: #{tpu_custom_call.1} parent=0 // pred_check
    _
  $region11: #{tpu_custom_call.1} parent=0 // pred_check_branch
    %61 = sbr.rel (0) target = $region13
  $region12: #{tpu_custom_call.1} parent=0 // pred_region
    _
  $region13: #{tpu_custom_call.1} parent=0 // pred_fallthru
    _

</llo_original>
